<compile_context>
chip_gen: v5e
topology: v5e:2x2
jax: 0.10.0
libtpu: 0.0.40
codegen_flags: <defaults>
</compile_context>

<pallas_src>
import functools

import jax
import jax.numpy as jnp
from jax.experimental import pallas as pl
from jax.experimental.pallas import tpu as pltpu


def _identity_kernel(x_ref, o_ref):
    # Straight VMEM tile copy — the exact semantics of LinearRegression.forward.
    o_ref[...] = x_ref[...]


def _sublane_multiple(dtype) -> int:
    """Native sublane packing for the dtype (f32 -> 8, bf16 -> 16, int8/fp8 -> 32)."""
    itemsize = jnp.dtype(dtype).itemsize
    if itemsize >= 4:
        return 8
    if itemsize == 2:
        return 16
    return 32


@functools.lru_cache(maxsize=1)
def _generation_params():
    """(target_tile_bytes, vmem_limit_bytes) tuned per TPU generation."""
    kind = ""
    try:
        kind = jax.devices()[0].device_kind.lower()
    except Exception:
        pass
    if "v7" in kind:
        # ~3.2 TB/s HBM makes per-step overhead relatively costly -> 8 MiB tiles;
        # 4 live buffers (in+out, double-buffered) = 32 MiB < 64 MiB physical VMEM.
        return 8 * 1024 * 1024, 40 << 20
    if "v6" in kind:
        # 8 MiB tiles; raise the 32 MiB scoped default to keep headroom.
        return 8 * 1024 * 1024, 40 << 20
    if "v5" in kind:
        # 16 MiB scoped default: 2 MiB tiles x 4 live buffers = 8 MiB, well inside.
        return 2 * 1024 * 1024, 16 << 20
    # Unknown generation: conservative.
    return 4 * 1024 * 1024, 32 << 20


def _choose_lane_width(n: int) -> int:
    """Largest 'nice' multiple of 128 that divides n exactly (no padding needed)."""
    for c in (2048, 1024, 512, 256, 128):
        if n % c == 0:
            return c
    return 0  # no lane-dense factorization exists


def _copy_impl(data: jax.Array) -> jax.Array:
    """Materialized identity: stream the array HBM->VMEM->HBM via Pallas."""
    orig_shape = data.shape
    dtype = data.dtype
    itemsize = jnp.dtype(dtype).itemsize
    n = data.size
    if n == 0:
        return data  # nothing to move

    cols = _choose_lane_width(n)
    if cols == 0:
        # No 128-divisible factorization: since the op is the identity, skip the
        # kernel rather than pay pad/concat/slice whole-array round trips.
        return data

    rows = n // cols
    x2d = data.reshape(rows, cols)  # lane-dense 2-D view; fuses under jit

    target_tile_bytes, vmem_limit = _generation_params()
    sub = _sublane_multiple(dtype)
    block_rows = max(sub, (target_tile_bytes // (cols * itemsize)) // sub * sub)
    if block_rows >= rows:
        block_rows = rows  # single full-extent tile (always a legal block shape)
    grid = (pl.cdiv(rows, block_rows),)

    out = pl.pallas_call(
        _identity_kernel,
        out_shape=jax.ShapeDtypeStruct((rows, cols), dtype),
        grid_spec=pltpu.PrefetchScalarGridSpec(
            num_scalar_prefetch=0,
            grid=grid,
            in_specs=[pl.BlockSpec((block_rows, cols), lambda i: (i, 0))],
            out_specs=pl.BlockSpec((block_rows, cols), lambda i: (i, 0)),
        ),
        compiler_params=pltpu.CompilerParams(
            # Parallel grid axis lets both v7x TensorCores issue DMAs; no-op on
            # single-TC v5e/v6e.
            dimension_semantics=("parallel",),
            vmem_limit_bytes=vmem_limit,
        ),
        # Pure-bandwidth custom call: tell XLA's scheduler there is no compute.
        cost_estimate=pl.CostEstimate(
            flops=0, transcendentals=0, bytes_accessed=2 * n * itemsize
        ),
        # NOTE: no input_output_aliases — without caller-side donation the alias
        # would force XLA to insert a defensive full-array copy.
    )(x2d)

    return out.reshape(orig_shape)


# jit so the reshape bookkeeping fuses with the pallas_call into one dispatch.
_materialized_copy = jax.jit(_copy_impl)


def linear_regression_forward(data: jax.Array, *, materialize_copy: bool = False) -> jax.Array:
    """LinearRegression.forward: the identity.

    By default returns `data` directly (no kernel — the op is a no-op, so the
    fastest implementation is no HBM traffic at all).  Set
    `materialize_copy=True` to produce a fresh buffer via the Pallas
    streaming-copy kernel.
    """
    if not materialize_copy:
        return data
    return _materialized_copy(data)


if __name__ == "__main__":
    key = jax.random.PRNGKey(0)
    # Small representative input; module is shape-agnostic identity.
    x = jax.random.normal(key, (2, 4, 16, 16), dtype=jnp.float32)

    # Default forward path: identity short-circuit, zero kernel launches.
    y_fast = linear_regression_forward(x)
    assert y_fast is x

    # Exercise the Pallas streaming-copy kernel once.
    y = linear_regression_forward(x, materialize_copy=True)
    jax.block_until_ready(y)

    assert y.shape == x.shape and y.dtype == x.dtype
    assert bool(jnp.all(y == x))
    print("KERNEL_OK")
</pallas_src>

<mosaic_0001>
module attributes {stable_mosaic.version = 11 : i64} {
  func.func @_identity_kernel(%arg0: i32, %arg1: memref<1x2048xf32, #tpu.memory_space<vmem>>, %arg2: memref<1x2048xf32, #tpu.memory_space<vmem>>) attributes {dimension_semantics = [#tpu.dimension_semantics<parallel>], iteration_bounds = array<i64: 1>, scalar_prefetch = 0 : i64, scratch_operands = 0 : i64, tpu.core_type = #tpu.core_type<tc>, window_params = [{transform_indices = @transform_0, window_bounds = array<i64: 1, 2048>}, {transform_indices = @transform_1, window_bounds = array<i64: 1, 2048>}]} {
    %c0 = arith.constant 0 : index
    %c0_0 = arith.constant 0 : index
    %0 = vector.load %arg1[%c0, %c0_0] : memref<1x2048xf32, #tpu.memory_space<vmem>>, vector<1x2048xf32>
    %c0_1 = arith.constant 0 : index
    %c0_2 = arith.constant 0 : index
    %1 = vector.load %arg2[%c0_1, %c0_2] : memref<1x2048xf32, #tpu.memory_space<vmem>>, vector<1x2048xf32>
    tpu.vector_store %arg2[%c0_1, %c0_2], %0 {strides = array<i32>} : memref<1x2048xf32, #tpu.memory_space<vmem>>, vector<1x2048xf32>,
    return
  }
  func.func @transform_0(%arg0: i32) -> (i32, i32) {
    %c0_i32 = arith.constant 0 : i32
    %c0_i32_0 = arith.constant 0 : i32
    return %arg0, %c0_i32 : i32, i32
  }
  func.func @transform_1(%arg0: i32) -> (i32, i32) {
    %c0_i32 = arith.constant 0 : i32
    %c0_i32_0 = arith.constant 0 : i32
    return %arg0, %c0_i32 : i32, i32
  }
}

</mosaic_0001>

<llo_original>
// kernel: _copy_impl.1
$region0: #{_copy_impl.1}
  #allocation0 [shape = 'u32[]', space=smem, size = 0x4, offset = 0x4, fixed_abs, tag = 'smem constant byte address 0x4 - core index']
  #allocation1 [shape = 'u32[72,128]{1,0:T(1,128)}', space=vmem, size = 0x9000, scoped, tag = 'internal scratch']
  %s0 = inlined_call_operand.vmem [shape: f32[1,2048], index: 0, kind: input, shape index: {}]
  %s1 = inlined_call_operand.vmem [shape: f32[1,2048], index: 1, kind: output, shape index: {}]
  %s2 = sld [smem:[#allocation0]]
  $region14: #{_copy_impl.1} parent=0
    _
  %s4 = ssub.s32 1, %s2
  %s5 = scalar_select 0, %s4, %s2
  // Predicated region
  $region2: #{_copy_impl.1} parent=0 // pred_check
    _
  $region3: #{_copy_impl.1} parent=0 // pred_check_branch
    %7 = sbr.rel (0) target = $region5
  $region4: #{_copy_impl.1} parent=0 // pred_region
    _
  $region5: #{_copy_impl.1} parent=0 // pred_fallthru
    _
  %v8 = vld [vmem:[%s0] sm:$0xff]
  %v9 = vld [vmem:[%s0 + $0x8] sm:$0xff]
  %10 = vst [vmem:[%s1] sm:$0xff] %v8
  %11 = vst [vmem:[%s1 + $0x8] sm:$0xff] %v9
  // Predicated region
  $region6: #{_copy_impl.1} parent=0 // pred_check
    _
  $region7: #{_copy_impl.1} parent=0 // pred_check_branch
    %13 = sbr.rel (0) target = $region9
  $region8: #{_copy_impl.1} parent=0 // pred_region
    _
  $region9: #{_copy_impl.1} parent=0 // pred_fallthru
    _
  // Predicated region
  $region10: #{_copy_impl.1} parent=0 // pred_check
    _
  $region11: #{_copy_impl.1} parent=0 // pred_check_branch
    %15 = sbr.rel (0) target = $region13
  $region12: #{_copy_impl.1} parent=0 // pred_region
    _
  $region13: #{_copy_impl.1} parent=0 // pred_fallthru
    _

</llo_original>
